<compile_context>
chip_gen: v7x
topology: tpu7x:2x2x1
jax: 0.10.0
libtpu: 0.0.40
codegen_flags: <defaults>
</compile_context>

<pallas_src>
import math

import jax
import jax.numpy as jnp
from jax import lax
from jax.experimental import pallas as pl
from jax.experimental.pallas import tpu as pltpu


def _largest_divisor_leq(n, cap):
    cap = max(1, min(n, cap))
    for d in range(cap, 0, -1):
        if n % d == 0:
            return d
    return 1


def _tpu_config():
    """Return (vmem_capacity_bytes, multi_core) with conservative fallbacks."""
    vmem_bytes = 128 << 20
    multi_core = False
    try:
        info = pltpu.get_tpu_info()
        vmem_bytes = int(getattr(info, "vmem_capacity_bytes", vmem_bytes))
    except Exception:
        pass
    try:
        kind = jax.devices()[0].device_kind.lower()
        if "v7" in kind:
            multi_core = True
    except Exception:
        pass
    # v7x-style chips expose ~64 MiB VMEM per TensorCore and have 2 TCs/chip.
    if vmem_bytes <= (64 << 20):
        multi_core = True
    return vmem_bytes, multi_core


def pixel_norm(x, dim=1, epsilon=1e-8):
    """Forward pass of PixelNormLayer as a Pallas TPU kernel."""
    shape = x.shape
    ndim = x.ndim
    dim = dim % ndim
    c = shape[dim]
    outer = math.prod(shape[:dim])
    inner = math.prod(shape[dim + 1:])

    if x.size == 0:
        return x

    itemsize = jnp.dtype(x.dtype).itemsize
    vmem_bytes, multi_core = _tpu_config()
    # Block byte budget: tighter on v7x (64 MiB VMEM/TC), roomier on 128 MiB chips.
    target_bytes = (4 << 20) if multi_core else (8 << 20)
    vmem_limit = int(0.75 * vmem_bytes)

    eps = float(epsilon)
    inv_c = 1.0 / float(c)

    elems = outer * c * inner
    cost = pl.CostEstimate(
        flops=3 * elems + 2 * outer * inner,     # square + reduce-add + scale
        transcendentals=outer * inner,           # one rsqrt per output pixel
        bytes_accessed=2 * elems * itemsize,     # read x + write y
    )

    # ---------------------------------------------------------------- 2-D path
    # Reduction over the LAST axis (e.g. (N, C) latents): put C on the lane
    # axis (lane-dense stores) and reduce over axis=-1 via the XLU.
    if inner == 1:
        x2 = x.reshape(outer, c)
        row_bytes = max(1, c * itemsize)
        rows_cap = max(1, target_bytes // row_bytes)

        # Largest multiple-of-8 divisor of `outer` within the budget
        # (sublane-dense and satisfies the (8, 128) block constraint);
        # otherwise fall back to the full axis.
        best8 = 0
        for d in range(8, min(outer, rows_cap) + 1, 8):
            if outer % d == 0:
                best8 = d
        rows_tile = best8 if best8 else outer

        if multi_core and (outer // rows_tile) < 2 and rows_tile % 16 == 0:
            rows_tile //= 2  # keep both v7x TensorCores busy

        def kernel2d(x_ref, o_ref):
            xv = x_ref[...].astype(jnp.float32)                    # (rows, C)
            ms = jnp.sum(xv * xv, axis=-1, keepdims=True) * inv_c  # mean sq over C
            inv_norm = lax.rsqrt(ms + eps)                         # EUP rsqrt
            # Re-cast in the store expression: no full-block f32 temp stays
            # live across the whole kernel.
            o_ref[...] = (x_ref[...].astype(jnp.float32) * inv_norm).astype(o_ref.dtype)

        out = pl.pallas_call(
            kernel2d,
            out_shape=jax.ShapeDtypeStruct((outer, c), x.dtype),
            grid=(outer // rows_tile,),
            in_specs=[pl.BlockSpec((rows_tile, c), lambda i: (i, 0))],
            out_specs=pl.BlockSpec((rows_tile, c), lambda i: (i, 0)),
            compiler_params=pltpu.CompilerParams(
                dimension_semantics=("parallel",),
                vmem_limit_bytes=vmem_limit,
            ),
            cost_estimate=cost,
        )(x2)
        return out.reshape(shape)

    # ---------------------------------------------------------------- 3-D path
    # View as (outer, C, inner); reshape of a contiguous array is free.
    x3 = x.reshape(outer, c, inner)
    plane_bytes = c * inner * itemsize  # one outer row

    if inner % 128 == 0 and plane_bytes > 2 * target_bytes:
        # Genuinely huge plane: split inner into lane-dense (x128) chunks.
        max_lane_groups = max(1, target_bytes // max(1, c * itemsize * 128))
        inner_tile = _largest_divisor_leq(inner // 128, max_lane_groups) * 128
    else:
        # Prefer the fully contiguous trailing axis (long HBM DMA rows); also
        # covers inner % 128 != 0 (block last dim == full array dim).
        # TODO(synk): a single (1, C, inner) plane that alone exceeds the VMEM
        # budget would need a reduction grid axis over C; not implemented.
        inner_tile = inner

    per_outer_bytes = max(1, c * inner_tile * itemsize)
    outer_cap = max(1, target_bytes // per_outer_bytes)
    outer_tile = _largest_divisor_leq(outer, outer_cap)

    if multi_core:
        # v7x: guarantee >= 2 grid blocks so both TensorCores get work.
        if (outer // outer_tile) * (inner // inner_tile) < 2:
            if outer_tile > 1:
                outer_tile = _largest_divisor_leq(outer, max(1, outer_tile // 2))
            elif inner_tile % 256 == 0:
                inner_tile //= 2

    grid = (outer // outer_tile, inner // inner_tile)
    block = (outer_tile, c, inner_tile)

    def kernel3d(x_ref, o_ref):
        xv = x_ref[...].astype(jnp.float32)                   # (bo, C, bi), f32 math
        ms = jnp.sum(xv * xv, axis=1, keepdims=True) * inv_c  # mean of squares over C
        inv_norm = lax.rsqrt(ms + eps)                        # EUP rsqrt
        # Re-cast the input in the store expression instead of reusing `xv`,
        # so the big f32 copy is not live across the whole kernel.
        o_ref[...] = (x_ref[...].astype(jnp.float32) * inv_norm).astype(o_ref.dtype)

    out = pl.pallas_call(
        kernel3d,
        out_shape=jax.ShapeDtypeStruct((outer, c, inner), x.dtype),
        grid=grid,
        in_specs=[pl.BlockSpec(block, lambda i, j: (i, 0, j))],
        out_specs=pl.BlockSpec(block, lambda i, j: (i, 0, j)),
        compiler_params=pltpu.CompilerParams(
            dimension_semantics=("parallel", "parallel"),
            vmem_limit_bytes=vmem_limit,
        ),
        cost_estimate=cost,
    )(x3)
    return out.reshape(shape)


if __name__ == "__main__":
    key = jax.random.PRNGKey(0)
    k1, k2 = jax.random.split(key)

    # NCHW feature-map case (main 3-D lane-dense path).
    x = jax.random.normal(k1, (2, 4, 16, 16), dtype=jnp.float32)
    y = pixel_norm(x, dim=1, epsilon=1e-8)
    jax.block_until_ready(y)
    assert y.shape == x.shape and y.dtype == x.dtype
    ref = x / jnp.sqrt(jnp.mean(x * x, axis=1, keepdims=True) + 1e-8)
    assert jnp.allclose(y, ref, atol=1e-5, rtol=1e-5), float(jnp.max(jnp.abs(y - ref)))

    # (N, C) latent case (2-D path, reduction over the last axis).
    z = jax.random.normal(k2, (8, 32), dtype=jnp.float32)
    yz = pixel_norm(z, dim=1, epsilon=1e-8)
    jax.block_until_ready(yz)
    assert yz.shape == z.shape and yz.dtype == z.dtype
    refz = z / jnp.sqrt(jnp.mean(z * z, axis=1, keepdims=True) + 1e-8)
    assert jnp.allclose(yz, refz, atol=1e-5, rtol=1e-5), float(jnp.max(jnp.abs(yz - refz)))

    print("KERNEL_OK")
</pallas_src>

<mosaic_0001>
module attributes {stable_mosaic.version = 11 : i64} {
  func.func @kernel3d(%arg0: i32, %arg1: i32, %arg2: memref<2x4x256xf32, #tpu.memory_space<vmem>>, %arg3: memref<2x4x256xf32, #tpu.memory_space<vmem>>) attributes {dimension_semantics = [#tpu.dimension_semantics<parallel>, #tpu.dimension_semantics<parallel>], iteration_bounds = array<i64: 1, 1>, scalar_prefetch = 0 : i64, scratch_operands = 0 : i64, tpu.core_type = #tpu.core_type<tc>, window_params = [{transform_indices = @transform_0, window_bounds = array<i64: 2, 4, 256>}, {transform_indices = @transform_1, window_bounds = array<i64: 2, 4, 256>}]} {
    %c0 = arith.constant 0 : index
    %c0_0 = arith.constant 0 : index
    %c0_1 = arith.constant 0 : index
    %0 = vector.load %arg2[%c0, %c0_0, %c0_1] : memref<2x4x256xf32, #tpu.memory_space<vmem>>, vector<2x4x256xf32>
    %1 = arith.mulf %0, %0 : vector<2x4x256xf32>
    %cst = arith.constant dense<0.000000e+00> : vector<2x256xf32>
    %2 = vector.multi_reduction <add>, %1, %cst [1] : vector<2x4x256xf32> to vector<2x256xf32>
    %3 = vector.shape_cast %2 : vector<2x256xf32> to vector<2x1x256xf32>
    %cst_2 = arith.constant 2.500000e-01 : f32
    %4 = vector.broadcast %cst_2 : f32 to vector<2x1x256xf32>
    %5 = arith.mulf %3, %4 : vector<2x1x256xf32>
    %cst_3 = arith.constant 9.99999993E-9 : f32
    %6 = vector.broadcast %cst_3 : f32 to vector<2x1x256xf32>
    %7 = arith.addf %5, %6 : vector<2x1x256xf32>
    %8 = math.rsqrt %7 : vector<2x1x256xf32>
    %c0_4 = arith.constant 0 : index
    %c0_5 = arith.constant 0 : index
    %c0_6 = arith.constant 0 : index
    %9 = vector.load %arg2[%c0_4, %c0_5, %c0_6] : memref<2x4x256xf32, #tpu.memory_space<vmem>>, vector<2x4x256xf32>
    %10 = vector.broadcast %8 : vector<2x1x256xf32> to vector<2x4x256xf32>
    %11 = arith.mulf %9, %10 : vector<2x4x256xf32>
    %c0_7 = arith.constant 0 : index
    %c0_8 = arith.constant 0 : index
    %c0_9 = arith.constant 0 : index
    %12 = vector.load %arg3[%c0_7, %c0_8, %c0_9] : memref<2x4x256xf32, #tpu.memory_space<vmem>>, vector<2x4x256xf32>
    tpu.vector_store %arg3[%c0_7, %c0_8, %c0_9], %11 {strides = array<i32>} : memref<2x4x256xf32, #tpu.memory_space<vmem>>, vector<2x4x256xf32>,
    return
  }
  func.func @transform_0(%arg0: i32, %arg1: i32) -> (i32, i32, i32) {
    %c0_i32 = arith.constant 0 : i32
    %c0_i32_0 = arith.constant 0 : i32
    return %arg0, %c0_i32, %arg1 : i32, i32, i32
  }
  func.func @transform_1(%arg0: i32, %arg1: i32) -> (i32, i32, i32) {
    %c0_i32 = arith.constant 0 : i32
    %c0_i32_0 = arith.constant 0 : i32
    return %arg0, %c0_i32, %arg1 : i32, i32, i32
  }
}

</mosaic_0001>

<llo_original>
// kernel: tpu_custom_call.1
$region0: #{tpu_custom_call.1}
  #allocation0 [shape = 'u32[]', space=smem, size = 0x4, offset = 0x4, fixed_abs, tag = 'smem constant byte address 0x4 - core index']
  #allocation1 [shape = 'u32[144,128]{1,0:T(1,128)}', space=vmem, size = 0x12000, scoped, tag = 'internal scratch']
  %s0 = inlined_call_operand.hbm [shape: f32[2,4,256], index: 0, kind: input, shape index: {}]
  %s1 = inlined_call_operand.hbm [shape: f32[2,4,256], index: 1, kind: output, shape index: {}]
  %s2 = sld [smem:[#allocation0]]
  $region18: #{tpu_custom_call.1} parent=0
    _
  %s4 = ssub.s32 1, %s2
  %s5 = scalar_select 0, %s4, %s2
  $region1: #{tpu_custom_call.1} parent=0
    #allocation2 [shape = 'u8[8192]{0}', space=vmem, size = 0x2000, scoped, tag = 'input window, operand 0, single buffered']
    #allocation3 [shape = 's32[1]{0}', space=sflag, size = 0x4, scoped, tag = 'scoped memory for tpu_custom_call.1']
    #allocation4 [shape = 's32[1]{0}', space=sflag, size = 0x4, scoped, tag = 'scoped memory for tpu_custom_call.1']
    #allocation5 [shape = 'u8[8192]{0}', space=vmem, size = 0x2000, scoped, tag = 'output window, operand 0, single buffered']
    %6 = vsyncpa [#allocation3], 0
    %7 = vsyncpa [#allocation4], 0
    // Predicated region
    $region2: #{tpu_custom_call.1} parent=1 // pred_check
      _
    $region3: #{tpu_custom_call.1} parent=1 // pred_check_branch
      %9 = sbr.rel (0) target = $region5
    $region4: #{tpu_custom_call.1} parent=1 // pred_region
      %s11 = ssub.s32 256, 256
      %12 = vsyncadd [#allocation3], %s11
      %s13 = sshll.u32 [#allocation2], 4
      %s14 = int_to_ptr.vmem [resolvable:$true] %s13
      %19 = dma.hbm_to_vmem [thread:$0]  %s0, 256, %s14, [#allocation3], 128, 128, 8
    $region5: #{tpu_custom_call.1} parent=1 // pred_fallthru
      _
    // Predicated region
    $region6: #{tpu_custom_call.1} parent=1 // pred_check
      _
    $region7: #{tpu_custom_call.1} parent=1 // pred_check_branch
      %21 = sbr.rel (0) target = $region9
    $region8: #{tpu_custom_call.1} parent=1 // pred_region
      %22 = dma.done [#allocation3], 256
    $region9: #{tpu_custom_call.1} parent=1 // pred_fallthru
      _
    %v23 = vld [vmem:[#allocation2] sm:$0xff]
    %v24 = vld [vmem:[#allocation2 + $0x8] sm:$0xff]
    %v25 = vmul.f32 %v23, %v23
    %v26 = vmul.f32 %v24, %v24
    %v29 = vcombine.high %v25, %v25
    %v30 = vcombine.high %v26, %v26
    %vm33 = vcmask 1043456
    %v34 = vsel %vm33, %v25, 0.0
    %v35 = vrot.slane %v34, 4
    %v36 = vadd.f32 %v34, %v35
    %v37 = vrot.slane %v36, 2
    %v38 = vadd.f32 %v36, %v37
    %v39 = vrot.slane %v38, 1
    %v40 = vadd.f32 %v38, %v39
    %v41 = vsel %vm33, %v29, 0.0
    %v42 = vrot.slane %v41, 4
    %v43 = vadd.f32 %v41, %v42
    %v44 = vrot.slane %v43, 2
    %v45 = vadd.f32 %v43, %v44
    %v46 = vrot.slane %v45, 1
    %v47 = vadd.f32 %v45, %v46
    %v48 = vsel %vm33, %v26, 0.0
    %v49 = vrot.slane %v48, 4
    %v50 = vadd.f32 %v48, %v49
    %v51 = vrot.slane %v50, 2
    %v52 = vadd.f32 %v50, %v51
    %v53 = vrot.slane %v52, 1
    %v54 = vadd.f32 %v52, %v53
    %v55 = vsel %vm33, %v30, 0.0
    %v56 = vrot.slane %v55, 4
    %v57 = vadd.f32 %v55, %v56
    %v58 = vrot.slane %v57, 2
    %v59 = vadd.f32 %v57, %v58
    %v60 = vrot.slane %v59, 1
    %v61 = vadd.f32 %v59, %v60
    %v62 = vmul.f32 %v40, 0.25
    %v63 = vmul.f32 %v47, 0.25
    %v64 = vmul.f32 %v54, 0.25
    %v65 = vmul.f32 %v61, 0.25
    %v66 = vadd.f32 %v62, 1e-08
    %v67 = vadd.f32 %v63, 1e-08
    %v68 = vadd.f32 %v64, 1e-08
    %v69 = vadd.f32 %v65, 1e-08
    %v70 = vrsqrt.pop %v66
    %v71 = vrsqrt.pop %v67
    %v72 = vrsqrt.pop %v68
    %v73 = vrsqrt.pop %v69
    %v78 = vcombine.low %v70, %v71
    %v79 = vcombine.low %v72, %v73
    %v82 = vmul.f32 %v23, %v78
    %v83 = vmul.f32 %v24, %v79
    %84 = vst [vmem:[#allocation5] sm:$0xff] %v82
    %85 = vst [vmem:[#allocation5 + $0x8] sm:$0xff] %v83
    // Predicated region
    $region10: #{tpu_custom_call.1} parent=1 // pred_check
      _
    $region11: #{tpu_custom_call.1} parent=1 // pred_check_branch
      %87 = sbr.rel (0) target = $region13
    $region12: #{tpu_custom_call.1} parent=1 // pred_region
      %s89 = ssub.s32 256, 256
      %90 = vsyncadd [#allocation4], %s89
      %s91 = sshll.u32 [#allocation5], 4
      %s92 = int_to_ptr.vmem [resolvable:$true] %s91
      %97 = dma.vmem_to_hbm [thread:$0]  %s92, 256, %s1, [#allocation4], 128, 128, 8
    $region13: #{tpu_custom_call.1} parent=1 // pred_fallthru
      _
    // Predicated region
    $region14: #{tpu_custom_call.1} parent=1 // pred_check
      _
    $region15: #{tpu_custom_call.1} parent=1 // pred_check_branch
      %99 = sbr.rel (0) target = $region17
    $region16: #{tpu_custom_call.1} parent=1 // pred_region
      %100 = dma.done [#allocation4], 256
    $region17: #{tpu_custom_call.1} parent=1 // pred_fallthru
      _
    %101 = vsyncpa [#allocation3], 1
    %102 = vsyncpa [#allocation4], 1

</llo_original>
